<compile_context>
chip_gen: v7x
topology: tpu7x:2x2x1
jax: 0.10.0
libtpu: 0.0.40
codegen_flags: <defaults>
</compile_context>

<pallas_src>
import jax
import jax.numpy as jnp
from jax.experimental import pallas as pl
from jax.experimental.pallas import tpu as pltpu


def _cond_linear_kernel(x_ref, w_ref, b_ref, y_ref, table_ref, out_ref):
    # Linear: x @ W on the MXU, f32 accumulate; bias broadcast on the VPU.
    acc = jnp.dot(x_ref[...], w_ref[...],
                  preferred_element_type=jnp.float32,
                  precision=jax.lax.Precision.HIGHEST)
    acc = acc + b_ref[...].astype(jnp.float32)             # (1, num_out) bcast

    # In-kernel embedding gather: gamma[i, :] = table[y[i], :], realised as a
    # one-hot (tile_b, n_steps) x (n_steps, num_out) matmul so it stays on the
    # MXU and needs no per-row dynamic indexing or HBM gamma round-trip.
    y_col = y_ref[...]                                      # (tile_b, 1) int32
    n_steps = table_ref.shape[0]
    steps = jax.lax.broadcasted_iota(jnp.int32, (y_col.shape[0], n_steps), 1)
    onehot = (y_col == steps).astype(table_ref.dtype)       # (tile_b, n_steps)
    gamma = jnp.dot(onehot, table_ref[...],
                    preferred_element_type=jnp.float32,
                    precision=jax.lax.Precision.HIGHEST)    # (tile_b, num_out)

    # f32 epilogue; cast only at the final store (lane-dense when num_out%128==0).
    out_ref[...] = (gamma * acc).astype(out_ref.dtype)


def _round_up(v, m):
    return ((v + m - 1) // m) * m


def _vmem_budget_bytes():
    """Generation-aware VMEM budget: ~75% of physical VMEM (v5e/v6e: 128 MiB,
    v7x: 64 MiB), leaving headroom for compiler scratch."""
    try:
        cap = int(pltpu.get_tpu_info().vmem_capacity_bytes)
    except Exception:
        cap = 64 * 1024 * 1024                               # v7x-conservative
    return max(16 * 1024 * 1024, (cap * 3) // 4)


def _pick_tile_b(batch, num_in, num_out, n_steps, budget, dtype_bytes=4):
    """Largest multiple of 8 (f32 sublane) whose true VMEM footprint
    (double-buffered tiles + double-buffered residents + f32 intermediates)
    stays under `budget`. Caps near ceil(B/2) for big batches so the grid has
    >= 2 steps (both v7x TensorCores participate)."""
    b8 = _round_up(max(batch, 1), 8)
    tile = min(4096, b8)
    if b8 >= 2048:                                           # enough work to split
        tile = min(tile, _round_up(pl.cdiv(batch, 2), 8))
    tile = max(8, (tile // 8) * 8)

    # Residents (W, bias, table) are still double-buffered by the pipeline.
    resident = 2 * (num_in * num_out + num_out + n_steps * num_out) * dtype_bytes
    while tile > 8:
        io = 2 * tile * (num_in + 1 + num_out) * dtype_bytes   # x, y, out (2x buf)
        interm = tile * (2 * num_out + n_steps) * 4            # acc, gamma, onehot
        if resident + io + interm <= budget:
            break
        tile -= 8
    return tile


def conditional_linear(x, y, weight_t, bias, embed_table):
    """x: (B, num_in) f32, y: (B,) int32, weight_t: (num_in, num_out),
    bias: (num_out,), embed_table: (n_steps, num_out). Returns (B, num_out)."""
    B, num_in = x.shape
    num_out = weight_t.shape[1]
    n_steps = embed_table.shape[0]

    budget = _vmem_budget_bytes()
    tile_b = _pick_tile_b(B, num_in, num_out, n_steps, budget)
    grid_b = pl.cdiv(B, tile_b)

    y2d = y.reshape(B, 1).astype(jnp.int32)
    bias2d = bias.reshape(1, num_out)

    flops = 2 * B * num_out * (num_in + n_steps)
    bytes_accessed = 4 * (B * num_in + num_in * num_out + num_out
                          + B + n_steps * num_out + B * num_out)

    return pl.pallas_call(
        _cond_linear_kernel,
        out_shape=jax.ShapeDtypeStruct((B, num_out), x.dtype),
        grid=(grid_b,),
        in_specs=[
            pl.BlockSpec((tile_b, num_in), lambda i: (i, 0)),      # x tile
            pl.BlockSpec((num_in, num_out), lambda i: (0, 0)),     # W resident
            pl.BlockSpec((1, num_out), lambda i: (0, 0)),          # bias resident
            pl.BlockSpec((tile_b, 1), lambda i: (i, 0)),           # y tile
            pl.BlockSpec((n_steps, num_out), lambda i: (0, 0)),    # table resident
        ],
        out_specs=pl.BlockSpec((tile_b, num_out), lambda i: (i, 0)),
        compiler_params=pltpu.CompilerParams(
            dimension_semantics=("parallel",),
            vmem_limit_bytes=int(budget)),
        cost_estimate=pl.CostEstimate(
            flops=flops, transcendentals=0, bytes_accessed=bytes_accessed),
    )(x, weight_t, bias2d, y2d, embed_table)


def _reference(x, y, weight_t, bias, embed_table):
    out = x @ weight_t + bias[None, :]
    gamma = embed_table[y]
    return gamma * out


if __name__ == "__main__":
    num_in, num_out, n_steps = 32, 128, 16

    key = jax.random.PRNGKey(0)
    kw, kb, ke, kd = jax.random.split(key, 4)

    # Deterministic parameter init mirroring nn.Linear / Embedding.uniform_():
    bound = 1.0 / (num_in ** 0.5)
    weight_t = jax.random.uniform(kw, (num_in, num_out), jnp.float32,
                                  minval=-bound, maxval=bound)
    bias = jax.random.uniform(kb, (num_out,), jnp.float32,
                              minval=-bound, maxval=bound)
    embed_table = jax.random.uniform(ke, (n_steps, num_out), jnp.float32,
                                     minval=0.0, maxval=1.0)

    ok = True
    # batch=10 exercises a partial (masked) last block; batch=2050 exercises a
    # multi-step grid (>=2 "parallel" steps) plus a partial last block.
    for idx, batch in enumerate((8, 10, 2050)):
        kx, ky = jax.random.split(jax.random.fold_in(kd, idx))
        x = jax.random.normal(kx, (batch, num_in), dtype=jnp.float32)
        y = jax.random.randint(ky, (batch,), 0, n_steps, dtype=jnp.int32)

        out = conditional_linear(x, y, weight_t, bias, embed_table)
        out = jax.block_until_ready(out)

        ref = _reference(x, y, weight_t, bias, embed_table)
        ok &= out.shape == (batch, num_out)
        ok &= bool(jnp.allclose(out, ref, atol=1e-5, rtol=1e-5))

    assert ok, "mismatch vs reference"
    print("KERNEL_OK")
</pallas_src>

<mosaic_0001>
module attributes {stable_mosaic.version = 11 : i64} {
  func.func @_cond_linear_kernel(%arg0: i32, %arg1: memref<8x32xf32, #tpu.memory_space<vmem>>, %arg2: memref<32x128xf32, #tpu.memory_space<vmem>>, %arg3: memref<1x128xf32, #tpu.memory_space<vmem>>, %arg4: memref<8x1xi32, #tpu.memory_space<vmem>>, %arg5: memref<16x128xf32, #tpu.memory_space<vmem>>, %arg6: memref<8x128xf32, #tpu.memory_space<vmem>>) attributes {dimension_semantics = [#tpu.dimension_semantics<parallel>], iteration_bounds = array<i64: 1>, scalar_prefetch = 0 : i64, scratch_operands = 0 : i64, tpu.core_type = #tpu.core_type<tc>, window_params = [{transform_indices = @transform_0, window_bounds = array<i64: 8, 32>}, {pipeline_mode = #tpu.pipeline_mode<synchronous>, transform_indices = @transform_1, window_bounds = array<i64: 32, 128>}, {pipeline_mode = #tpu.pipeline_mode<synchronous>, transform_indices = @transform_2, window_bounds = array<i64: 1, 128>}, {transform_indices = @transform_3, window_bounds = array<i64: 8, 1>}, {pipeline_mode = #tpu.pipeline_mode<synchronous>, transform_indices = @transform_4, window_bounds = array<i64: 16, 128>}, {transform_indices = @transform_5, window_bounds = array<i64: 8, 128>}]} {
    %c0 = arith.constant 0 : index
    %c0_0 = arith.constant 0 : index
    %0 = vector.load %arg1[%c0, %c0_0] : memref<8x32xf32, #tpu.memory_space<vmem>>, vector<8x32xf32>
    %c0_1 = arith.constant 0 : index
    %c0_2 = arith.constant 0 : index
    %1 = vector.load %arg2[%c0_1, %c0_2] : memref<32x128xf32, #tpu.memory_space<vmem>>, vector<32x128xf32>
    %cst = arith.constant dense<0.000000e+00> : vector<8x128xf32>
    %2 = tpu.matmul %0, %1, %cst {dimension_numbers = #tpu.dot_dimension_numbers<[1], [0], [0], [1], [0, 0, 1, 1], [], []>, precision = #tpu.contract_precision<fp32>} : vector<8x32xf32>, vector<32x128xf32>, vector<8x128xf32> -> vector<8x128xf32>
    %c0_3 = arith.constant 0 : index
    %c0_4 = arith.constant 0 : index
    %3 = vector.load %arg3[%c0_3, %c0_4] : memref<1x128xf32, #tpu.memory_space<vmem>>, vector<1x128xf32>
    %4 = vector.broadcast %3 : vector<1x128xf32> to vector<8x128xf32>
    %5 = arith.addf %2, %4 : vector<8x128xf32>
    %c0_5 = arith.constant 0 : index
    %c0_6 = arith.constant 0 : index
    %6 = vector.load %arg4[%c0_5, %c0_6] : memref<8x1xi32, #tpu.memory_space<vmem>>, vector<8x1xi32>
    %7 = tpu.iota {dimensions = array<i32: 1>} : vector<8x16xi32>
    %8 = vector.broadcast %6 : vector<8x1xi32> to vector<8x16xi32>
    %9 = arith.cmpi eq, %8, %7 : vector<8x16xi32>
    %10 = arith.extui %9 : vector<8x16xi1> to vector<8x16xi32>
    %11 = arith.sitofp %10 : vector<8x16xi32> to vector<8x16xf32>
    %c0_7 = arith.constant 0 : index
    %c0_8 = arith.constant 0 : index
    %12 = vector.load %arg5[%c0_7, %c0_8] : memref<16x128xf32, #tpu.memory_space<vmem>>, vector<16x128xf32>
    %cst_9 = arith.constant dense<0.000000e+00> : vector<8x128xf32>
    %13 = tpu.matmul %11, %12, %cst_9 {dimension_numbers = #tpu.dot_dimension_numbers<[1], [0], [0], [1], [0, 0, 1, 1], [], []>, precision = #tpu.contract_precision<fp32>} : vector<8x16xf32>, vector<16x128xf32>, vector<8x128xf32> -> vector<8x128xf32>
    %14 = arith.mulf %13, %5 : vector<8x128xf32>
    %c0_10 = arith.constant 0 : index
    %c0_11 = arith.constant 0 : index
    %15 = vector.load %arg6[%c0_10, %c0_11] : memref<8x128xf32, #tpu.memory_space<vmem>>, vector<8x128xf32>
    tpu.vector_store %arg6[%c0_10, %c0_11], %14 {strides = array<i32>} : memref<8x128xf32, #tpu.memory_space<vmem>>, vector<8x128xf32>,
    return
  }
  func.func @transform_0(%arg0: i32) -> (i32, i32) {
    %c0_i32 = arith.constant 0 : i32
    %c0_i32_0 = arith.constant 0 : i32
    return %arg0, %c0_i32 : i32, i32
  }
  func.func @transform_1(%arg0: i32) -> (i32, i32) {
    %c0_i32 = arith.constant 0 : i32
    %c0_i32_0 = arith.constant 0 : i32
    %c0_i32_1 = arith.constant 0 : i32
    return %c0_i32, %c0_i32_0 : i32, i32
  }
  func.func @transform_2(%arg0: i32) -> (i32, i32) {
    %c0_i32 = arith.constant 0 : i32
    %c0_i32_0 = arith.constant 0 : i32
    %c0_i32_1 = arith.constant 0 : i32
    return %c0_i32, %c0_i32_0 : i32, i32
  }
  func.func @transform_3(%arg0: i32) -> (i32, i32) {
    %c0_i32 = arith.constant 0 : i32
    %c0_i32_0 = arith.constant 0 : i32
    return %arg0, %c0_i32 : i32, i32
  }
  func.func @transform_4(%arg0: i32) -> (i32, i32) {
    %c0_i32 = arith.constant 0 : i32
    %c0_i32_0 = arith.constant 0 : i32
    %c0_i32_1 = arith.constant 0 : i32
    return %c0_i32, %c0_i32_0 : i32, i32
  }
  func.func @transform_5(%arg0: i32) -> (i32, i32) {
    %c0_i32 = arith.constant 0 : i32
    %c0_i32_0 = arith.constant 0 : i32
    return %arg0, %c0_i32 : i32, i32
  }
}

</mosaic_0001>

<llo_original>
// kernel: tpu_custom_call.1
$region0: #{tpu_custom_call.1}
  #allocation0 [shape = 'u32[]', space=smem, size = 0x4, offset = 0x4, fixed_abs, tag = 'smem constant byte address 0x4 - core index']
  #allocation1 [shape = 'u32[144,128]{1,0:T(1,128)}', space=vmem, size = 0x12000, scoped, tag = 'internal scratch']
  %s0 = inlined_call_operand.vmem [shape: f32[8,32], index: 0, kind: input, shape index: {}]
  %s1 = inlined_call_operand.hbm [shape: f32[32,128], index: 1, kind: input, shape index: {}]
  %s2 = inlined_call_operand.hbm [shape: f32[1,128], index: 2, kind: input, shape index: {}]
  %s3 = inlined_call_operand.vmem [shape: s32[8,1], index: 3, kind: input, shape index: {}]
  %s4 = inlined_call_operand.vmem [shape: f32[16,128], index: 4, kind: input, shape index: {}]
  %s5 = inlined_call_operand.hbm [shape: f32[8,128], index: 5, kind: output, shape index: {}]
  %s6 = sld [smem:[#allocation0]]
  $region38: #{tpu_custom_call.1} parent=0
    _
  %s8 = ssub.s32 1, %s6
  %s9 = scalar_select 0, %s8, %s6
  $region1: #{tpu_custom_call.1} parent=0
    #allocation2 [shape = 'u8[16384]{0}', space=vmem, size = 0x4000, scoped, tag = 'input window, operand 1, single buffered']
    #allocation3 [shape = 's32[1]{0}', space=sflag, size = 0x4, scoped, tag = 'scoped memory for tpu_custom_call.1']
    #allocation4 [shape = 's32[1]{0}', space=sflag, size = 0x4, scoped, tag = 'scoped memory for tpu_custom_call.1']
    #allocation5 [shape = 'u8[512]{0}', space=vmem, size = 0x400, scoped, tag = 'input window, operand 2, single buffered']
    #allocation6 [shape = 's32[1]{0}', space=sflag, size = 0x4, scoped, tag = 'scoped memory for tpu_custom_call.1']
    #allocation7 [shape = 'u8[4096]{0}', space=vmem, size = 0x1000, scoped, tag = 'output window, operand 0, single buffered']
    %10 = vsyncpa [#allocation3], 0
    %11 = vsyncpa [#allocation6], 0
    %12 = vsyncpa [#allocation4], 0
    // Predicated region
    $region2: #{tpu_custom_call.1} parent=1 // pred_check
      _
    $region3: #{tpu_custom_call.1} parent=1 // pred_check_branch
      %14 = sbr.rel (0) target = $region5
    $region4: #{tpu_custom_call.1} parent=1 // pred_region
      _
    $region5: #{tpu_custom_call.1} parent=1 // pred_fallthru
      _
    // Predicated region
    $region6: #{tpu_custom_call.1} parent=1 // pred_check
      _
    $region7: #{tpu_custom_call.1} parent=1 // pred_check_branch
      %16 = sbr.rel (0) target = $region9
    $region8: #{tpu_custom_call.1} parent=1 // pred_region
      %s18 = ssub.s32 512, 512
      %19 = vsyncadd [#allocation3], %s18
      %s20 = sshll.u32 [#allocation2], 4
      %s21 = int_to_ptr.vmem [resolvable:$true] %s20
      %26 = dma.hbm_to_vmem [thread:$0]  %s1, 512, %s21, [#allocation3], 128, 128, 8
    $region9: #{tpu_custom_call.1} parent=1 // pred_fallthru
      _
    // Predicated region
    $region10: #{tpu_custom_call.1} parent=1 // pred_check
      _
    $region11: #{tpu_custom_call.1} parent=1 // pred_check_branch
      %28 = sbr.rel (0) target = $region13
    $region12: #{tpu_custom_call.1} parent=1 // pred_region
      %s30 = ssub.s32 16, 16
      %31 = vsyncadd [#allocation6], %s30
      %s33 = sshll.u32 [#allocation5], 4
      %s34 = int_to_ptr.vmem [resolvable:$true] %s33
      %36 = dma.hbm_to_vmem [thread:$0]  %s2, 16, %s34, [#allocation6]
    $region13: #{tpu_custom_call.1} parent=1 // pred_fallthru
      _
    // Predicated region
    $region14: #{tpu_custom_call.1} parent=1 // pred_check
      _
    $region15: #{tpu_custom_call.1} parent=1 // pred_check_branch
      %38 = sbr.rel (0) target = $region17
    $region16: #{tpu_custom_call.1} parent=1 // pred_region
      _
    $region17: #{tpu_custom_call.1} parent=1 // pred_fallthru
      _
    // Predicated region
    $region18: #{tpu_custom_call.1} parent=1 // pred_check
      _
    $region19: #{tpu_custom_call.1} parent=1 // pred_check_branch
      %40 = sbr.rel (0) target = $region21
    $region20: #{tpu_custom_call.1} parent=1 // pred_region
      _
    $region21: #{tpu_custom_call.1} parent=1 // pred_fallthru
      _
    // Predicated region
    $region22: #{tpu_custom_call.1} parent=1 // pred_check
      _
    $region23: #{tpu_custom_call.1} parent=1 // pred_check_branch
      %42 = sbr.rel (0) target = $region25
    $region24: #{tpu_custom_call.1} parent=1 // pred_region
      %43 = dma.done [#allocation3], 512
    $region25: #{tpu_custom_call.1} parent=1 // pred_fallthru
      _
    // Predicated region
    $region26: #{tpu_custom_call.1} parent=1 // pred_check
      _
    $region27: #{tpu_custom_call.1} parent=1 // pred_check_branch
      %45 = sbr.rel (0) target = $region29
    $region28: #{tpu_custom_call.1} parent=1 // pred_region
      %46 = dma.done [#allocation6], 16
    $region29: #{tpu_custom_call.1} parent=1 // pred_fallthru
      _
    %v47 = vld [vmem:[%s0] sm:$0xff]
    %v48 = vld [vmem:[#allocation2] sm:$0xff]
    %v49 = vld [vmem:[#allocation2 + $0x8] sm:$0xff]
    %v50 = vld [vmem:[#allocation2 + $0x10] sm:$0xff]
    %v51 = vld [vmem:[#allocation2 + $0x18] sm:$0xff]
    %v52 = vld [vmem:[#allocation5] sm:$0x1]
    %v54 = vlaneseq
    %v55 = vshrl.u32 %v54, 7
    %v56 = vsub.s32 0, %v55
    %v57 = vrot.slane %v52, %v56
    %vm59 = vcmask 261120
    %v61 = vsel %vm59, %v47, 0
    %63 = vmatprep.subr.mxu0 0.0
    %v64 = vand.u32 %v48, 4294901760
    %65 = vmatpush1.msra.mxu0 %v64
    %66 = vmatprep.subr.mxu0 0.0
    %v67 = vand.u32 %v49, 4294901760
    %68 = vmatpush1.msra.mxu0 %v67
    %69 = vmatprep.subr.mxu0 0.0
    %v70 = vand.u32 %v50, 4294901760
    %71 = vmatpush1.msra.mxu0 %v70
    %72 = vmatprep.subr.mxu0 0.0
    %v73 = vand.u32 %v51, 4294901760
    %74 = vmatpush1.msra.mxu0 %v73
    %75 = vmatprep.subr.mxu0 0.0
    %76 = vmatpush1.msra.mxu0 0.0
    %77 = vmatprep.subr.mxu0 0.0
    %78 = vmatpush1.msra.mxu0 0.0
    %79 = vmatprep.subr.mxu0 0.0
    %80 = vmatpush1.msra.mxu0 0.0
    %81 = vmatprep.subr.mxu0 0.0
    %82 = vmatpush1.msra.mxu0 0.0
    %83 = vmatprep.subr.mxu0 0.0
    %84 = vmatpush1.msra.mxu0 0.0
    %85 = vmatprep.subr.mxu0 0.0
    %86 = vmatpush1.msra.mxu0 0.0
    %87 = vmatprep.subr.mxu0 0.0
    %88 = vmatpush1.msra.mxu0 0.0
    %89 = vmatprep.subr.mxu0 0.0
    %90 = vmatpush1.msra.mxu0 0.0
    %91 = vmatprep.subr.mxu0 0.0
    %92 = vmatpush1.msra.mxu0 0.0
    %93 = vmatprep.subr.mxu0 0.0
    %94 = vmatpush1.msra.mxu0 0.0
    %95 = vmatprep.subr.mxu0 0.0
    %96 = vmatpush1.msra.mxu0 0.0
    %97 = vmatprep.subr.mxu0 0.0
    %98 = vmatpush1.msra.mxu0 0.0
    %99 = vmatprep.subr.mxu0 0.0
    %100 = vmatpush1.msra.mxu0 0.0
    %101 = vmatprep.subr.mxu0 0.0
    %102 = vmatpush1.msra.mxu0 0.0
    %103 = vmatprep.subr.mxu0 0.0
    %104 = vmatpush1.msra.mxu0 0.0
    %105 = vmatprep.subr.mxu0 0.0
    %106 = vmatpush1.msra.mxu0 0.0
    %107 = vmatprep.subr.mxu0 0.0
    %108 = vmatpush1.msra.mxu0 0.0
    %109 = vmatprep.subr.mxu0 0.0
    %110 = vmatpush1.msra.mxu0 0.0
    %111 = vmatprep.subr.mxu0 0.0
    %112 = vmatpush1.msra.mxu0 0.0
    %113 = vmatprep.subr.mxu0 0.0
    %114 = vmatpush1.msra.mxu0 0.0
    %115 = vmatprep.subr.mxu0 0.0
    %116 = vmatpush1.msra.mxu0 0.0
    %117 = vmatprep.subr.mxu0 0.0
    %118 = vmatpush1.msra.mxu0 0.0
    %119 = vmatprep.subr.mxu0 0.0
    %120 = vmatpush1.msra.mxu0 0.0
    %121 = vmatprep.subr.mxu0 0.0
    %122 = vmatpush1.msra.mxu0 0.0
    %123 = vmatprep.subr.mxu0 0.0
    %124 = vmatpush1.msra.mxu0 0.0
    %125 = vmatprep.subr.mxu0 0.0
    %126 = vmatpush1.msra.mxu0 0.0
    %127 = vmatprep.subr.mxu0 0.0
    %128 = vmatpush1.msra.mxu0 0.0
    %129 = vmatprep.subr.mxu0 0.0
    %130 = vmatpush1.msra.mxu0 0.0
    %131 = vmatprep.mubr.f32.mxu0 0.0
    %v132 = vand.u32 %v61, 4294901760
    %v133 = vsub.f32 %v61, %v132
    %v134 = vand.u32 %v133, 4294901760
    %v135 = vsub.f32 %v133, %v134
    %v136 = vand.u32 %v135, 4294901760
    %137 = vmatmul.mubr.f32.gmra.mrb[0].mxu0 %v136
    %v138 = vpop.f32.mrb[0].mxu0
    %v139 = vadd.f32 %v57, %v138
    %v140 = vpop.f32.mrb[0].mxu0
    %141 = vdwg.mxu0
    %142 = vmatprep.subr.mxu0 0.0
    %v143 = vand.u32 %v48, 4294901760
    %v144 = vsub.f32 %v48, %v143
    %v145 = vand.u32 %v144, 4294901760
    %v146 = vsub.f32 %v144, %v145
    %v147 = vand.u32 %v146, 4294901760
    %148 = vmatpush1.msra.mxu0 %v147
    %149 = vmatprep.subr.mxu0 0.0
    %v150 = vand.u32 %v49, 4294901760
    %v151 = vsub.f32 %v49, %v150
    %v152 = vand.u32 %v151, 4294901760
    %v153 = vsub.f32 %v151, %v152
    %v154 = vand.u32 %v153, 4294901760
    %155 = vmatpush1.msra.mxu0 %v154
    %156 = vmatprep.subr.mxu0 0.0
    %v157 = vand.u32 %v50, 4294901760
    %v158 = vsub.f32 %v50, %v157
    %v159 = vand.u32 %v158, 4294901760
    %v160 = vsub.f32 %v158, %v159
    %v161 = vand.u32 %v160, 4294901760
    %162 = vmatpush1.msra.mxu0 %v161
    %163 = vmatprep.subr.mxu0 0.0
    %v164 = vand.u32 %v51, 4294901760
    %v165 = vsub.f32 %v51, %v164
    %v166 = vand.u32 %v165, 4294901760
    %v167 = vsub.f32 %v165, %v166
    %v168 = vand.u32 %v167, 4294901760
    %169 = vmatpush1.msra.mxu0 %v168
    %170 = vmatprep.subr.mxu0 0.0
    %171 = vmatpush1.msra.mxu0 0.0
    %172 = vmatprep.subr.mxu0 0.0
    %173 = vmatpush1.msra.mxu0 0.0
    %174 = vmatprep.subr.mxu0 0.0
    %175 = vmatpush1.msra.mxu0 0.0
    %176 = vmatprep.subr.mxu0 0.0
    %177 = vmatpush1.msra.mxu0 0.0
    %178 = vmatprep.subr.mxu0 0.0
    %179 = vmatpush1.msra.mxu0 0.0
    %180 = vmatprep.subr.mxu0 0.0
    %181 = vmatpush1.msra.mxu0 0.0
    %182 = vmatprep.subr.mxu0 0.0
    %183 = vmatpush1.msra.mxu0 0.0
    %184 = vmatprep.subr.mxu0 0.0
    %185 = vmatpush1.msra.mxu0 0.0
    %186 = vmatprep.subr.mxu0 0.0
    %187 = vmatpush1.msra.mxu0 0.0
    %188 = vmatprep.subr.mxu0 0.0
    %189 = vmatpush1.msra.mxu0 0.0
    %190 = vmatprep.subr.mxu0 0.0
    %191 = vmatpush1.msra.mxu0 0.0
    %192 = vmatprep.subr.mxu0 0.0
    %193 = vmatpush1.msra.mxu0 0.0
    %194 = vmatprep.subr.mxu0 0.0
    %195 = vmatpush1.msra.mxu0 0.0
    %196 = vmatprep.subr.mxu0 0.0
    %197 = vmatpush1.msra.mxu0 0.0
    %198 = vmatprep.subr.mxu0 0.0
    %199 = vmatpush1.msra.mxu0 0.0
    %200 = vmatprep.subr.mxu0 0.0
    %201 = vmatpush1.msra.mxu0 0.0
    %202 = vmatprep.subr.mxu0 0.0
    %203 = vmatpush1.msra.mxu0 0.0
    %204 = vmatprep.subr.mxu0 0.0
    %205 = vmatpush1.msra.mxu0 0.0
    %206 = vmatprep.subr.mxu0 0.0
    %207 = vmatpush1.msra.mxu0 0.0
    %208 = vmatprep.subr.mxu0 0.0
    %209 = vmatpush1.msra.mxu0 0.0
    %210 = vmatprep.subr.mxu0 0.0
    %211 = vmatpush1.msra.mxu0 0.0
    %212 = vmatprep.subr.mxu0 0.0
    %213 = vmatpush1.msra.mxu0 0.0
    %214 = vmatprep.subr.mxu0 0.0
    %215 = vmatpush1.msra.mxu0 0.0
    %216 = vmatprep.subr.mxu0 0.0
    %217 = vmatpush1.msra.mxu0 0.0
    %218 = vmatprep.subr.mxu0 0.0
    %219 = vmatpush1.msra.mxu0 0.0
    %220 = vmatprep.subr.mxu0 0.0
    %221 = vmatpush1.msra.mxu0 0.0
    %222 = vmatprep.subr.mxu0 0.0
    %223 = vmatpush1.msra.mxu0 0.0
    %224 = vmatprep.subr.mxu0 0.0
    %225 = vmatpush1.msra.mxu0 0.0
    %226 = vmatprep.mubr.f32.mxu0 0.0
    %v227 = vand.u32 %v61, 4294901760
    %228 = vmatmul.mubr.f32.gmra.mrb[0].mxu0 %v227
    %v229 = vpop.f32.mrb[0].mxu0
    %v230 = vadd.f32 %v139, %v229
    %v231 = vpop.f32.mrb[0].mxu0
    %232 = vdwg.mxu0
    %233 = vmatprep.subr.mxu0 0.0
    %v234 = vand.u32 %v48, 4294901760
    %v235 = vsub.f32 %v48, %v234
    %236 = vmatpush1.msra.mxu0 %v235
    %237 = vmatprep.subr.mxu0 0.0
    %v238 = vand.u32 %v49, 4294901760
    %v239 = vsub.f32 %v49, %v238
    %240 = vmatpush1.msra.mxu0 %v239
    %241 = vmatprep.subr.mxu0 0.0
    %v242 = vand.u32 %v50, 4294901760
    %v243 = vsub.f32 %v50, %v242
    %244 = vmatpush1.msra.mxu0 %v243
    %245 = vmatprep.subr.mxu0 0.0
    %v246 = vand.u32 %v51, 4294901760
    %v247 = vsub.f32 %v51, %v246
    %248 = vmatpush1.msra.mxu0 %v247
    %249 = vmatprep.subr.mxu0 0.0
    %250 = vmatpush1.msra.mxu0 0.0
    %251 = vmatprep.subr.mxu0 0.0
    %252 = vmatpush1.msra.mxu0 0.0
    %253 = vmatprep.subr.mxu0 0.0
    %254 = vmatpush1.msra.mxu0 0.0
    %255 = vmatprep.subr.mxu0 0.0
    %256 = vmatpush1.msra.mxu0 0.0
    %257 = vmatprep.subr.mxu0 0.0
    %258 = vmatpush1.msra.mxu0 0.0
    %259 = vmatprep.subr.mxu0 0.0
    %260 = vmatpush1.msra.mxu0 0.0
    %261 = vmatprep.subr.mxu0 0.0
    %262 = vmatpush1.msra.mxu0 0.0
    %263 = vmatprep.subr.mxu0 0.0
    %264 = vmatpush1.msra.mxu0 0.0
    %265 = vmatprep.subr.mxu0 0.0
    %266 = vmatpush1.msra.mxu0 0.0
    %267 = vmatprep.subr.mxu0 0.0
    %268 = vmatpush1.msra.mxu0 0.0
    %269 = vmatprep.subr.mxu0 0.0
    %270 = vmatpush1.msra.mxu0 0.0
    %271 = vmatprep.subr.mxu0 0.0
    %272 = vmatpush1.msra.mxu0 0.0
    %273 = vmatprep.subr.mxu0 0.0
    %274 = vmatpush1.msra.mxu0 0.0
    %275 = vmatprep.subr.mxu0 0.0
    %276 = vmatpush1.msra.mxu0 0.0
    %277 = vmatprep.subr.mxu0 0.0
    %278 = vmatpush1.msra.mxu0 0.0
    %279 = vmatprep.subr.mxu0 0.0
    %280 = vmatpush1.msra.mxu0 0.0
    %281 = vmatprep.subr.mxu0 0.0
    %282 = vmatpush1.msra.mxu0 0.0
    %283 = vmatprep.subr.mxu0 0.0
    %284 = vmatpush1.msra.mxu0 0.0
    %285 = vmatprep.subr.mxu0 0.0
    %286 = vmatpush1.msra.mxu0 0.0
    %287 = vmatprep.subr.mxu0 0.0
    %288 = vmatpush1.msra.mxu0 0.0
    %289 = vmatprep.subr.mxu0 0.0
    %290 = vmatpush1.msra.mxu0 0.0
    %291 = vmatprep.subr.mxu0 0.0
    %292 = vmatpush1.msra.mxu0 0.0
    %293 = vmatprep.subr.mxu0 0.0
    %294 = vmatpush1.msra.mxu0 0.0
    %295 = vmatprep.subr.mxu0 0.0
    %296 = vmatpush1.msra.mxu0 0.0
    %297 = vmatprep.subr.mxu0 0.0
    %298 = vmatpush1.msra.mxu0 0.0
    %299 = vmatprep.subr.mxu0 0.0
    %300 = vmatpush1.msra.mxu0 0.0
    %301 = vmatprep.subr.mxu0 0.0
    %302 = vmatpush1.msra.mxu0 0.0
    %303 = vmatprep.subr.mxu0 0.0
    %304 = vmatpush1.msra.mxu0 0.0
    %305 = vmatprep.mubr.f32.mxu0 0.0
    %v306 = vand.u32 %v61, 4294901760
    %v307 = vsub.f32 %v61, %v306
    %308 = vmatmul.mubr.f32.gmra.mrb[0].mxu0 %v307
    %v309 = vpop.f32.mrb[0].mxu0
    %v310 = vadd.f32 %v230, %v309
    %v311 = vpop.f32.mrb[0].mxu0
    %312 = vdwg.mxu0
    %313 = vmatprep.subr.mxu0 0.0
    %v314 = vand.u32 %v48, 4294901760
    %315 = vmatpush1.msra.mxu0 %v314
    %316 = vmatprep.subr.mxu0 0.0
    %v317 = vand.u32 %v49, 4294901760
    %318 = vmatpush1.msra.mxu0 %v317
    %319 = vmatprep.subr.mxu0 0.0
    %v320 = vand.u32 %v50, 4294901760
    %321 = vmatpush1.msra.mxu0 %v320
    %322 = vmatprep.subr.mxu0 0.0
    %v323 = vand.u32 %v51, 4294901760
    %324 = vmatpush1.msra.mxu0 %v323
    %325 = vmatprep.subr.mxu0 0.0
    %326 = vmatpush1.msra.mxu0 0.0
    %327 = vmatprep.subr.mxu0 0.0
    %328 = vmatpush1.msra.mxu0 0.0
    %329 = vmatprep.subr.mxu0 0.0
    %330 = vmatpush1.msra.mxu0 0.0
    %331 = vmatprep.subr.mxu0 0.0
    %332 = vmatpush1.msra.mxu0 0.0
    %333 = vmatprep.subr.mxu0 0.0
    %334 = vmatpush1.msra.mxu0 0.0
    %335 = vmatprep.subr.mxu0 0.0
    %336 = vmatpush1.msra.mxu0 0.0
    %337 = vmatprep.subr.mxu0 0.0
    %338 = vmatpush1.msra.mxu0 0.0
    %339 = vmatprep.subr.mxu0 0.0
    %340 = vmatpush1.msra.mxu0 0.0
    %341 = vmatprep.subr.mxu0 0.0
    %342 = vmatpush1.msra.mxu0 0.0
    %343 = vmatprep.subr.mxu0 0.0
    %344 = vmatpush1.msra.mxu0 0.0
    %345 = vmatprep.subr.mxu0 0.0
    %346 = vmatpush1.msra.mxu0 0.0
    %347 = vmatprep.subr.mxu0 0.0
    %348 = vmatpush1.msra.mxu0 0.0
    %349 = vmatprep.subr.mxu0 0.0
    %350 = vmatpush1.msra.mxu0 0.0
    %351 = vmatprep.subr.mxu0 0.0
    %352 = vmatpush1.msra.mxu0 0.0
    %353 = vmatprep.subr.mxu0 0.0
    %354 = vmatpush1.msra.mxu0 0.0
    %355 = vmatprep.subr.mxu0 0.0
    %356 = vmatpush1.msra.mxu0 0.0
    %357 = vmatprep.subr.mxu0 0.0
    %358 = vmatpush1.msra.mxu0 0.0
    %359 = vmatprep.subr.mxu0 0.0
    %360 = vmatpush1.msra.mxu0 0.0
    %361 = vmatprep.subr.mxu0 0.0
    %362 = vmatpush1.msra.mxu0 0.0
    %363 = vmatprep.subr.mxu0 0.0
    %364 = vmatpush1.msra.mxu0 0.0
    %365 = vmatprep.subr.mxu0 0.0
    %366 = vmatpush1.msra.mxu0 0.0
    %367 = vmatprep.subr.mxu0 0.0
    %368 = vmatpush1.msra.mxu0 0.0
    %369 = vmatprep.subr.mxu0 0.0
    %370 = vmatpush1.msra.mxu0 0.0
    %371 = vmatprep.subr.mxu0 0.0
    %372 = vmatpush1.msra.mxu0 0.0
    %373 = vmatprep.subr.mxu0 0.0
    %374 = vmatpush1.msra.mxu0 0.0
    %375 = vmatprep.subr.mxu0 0.0
    %376 = vmatpush1.msra.mxu0 0.0
    %377 = vmatprep.subr.mxu0 0.0
    %378 = vmatpush1.msra.mxu0 0.0
    %379 = vmatprep.subr.mxu0 0.0
    %380 = vmatpush1.msra.mxu0 0.0
    %381 = vmatprep.mubr.f32.mxu0 0.0
    %v382 = vand.u32 %v61, 4294901760
    %v383 = vsub.f32 %v61, %v382
    %v384 = vand.u32 %v383, 4294901760
    %385 = vmatmul.mubr.f32.gmra.mrb[0].mxu0 %v384
    %v386 = vpop.f32.mrb[0].mxu0
    %v387 = vadd.f32 %v310, %v386
    %v388 = vpop.f32.mrb[0].mxu0
    %389 = vdwg.mxu0
    %390 = vmatprep.subr.mxu0 0.0
    %v391 = vand.u32 %v48, 4294901760
    %v392 = vsub.f32 %v48, %v391
    %v393 = vand.u32 %v392, 4294901760
    %394 = vmatpush1.msra.mxu0 %v393
    %395 = vmatprep.subr.mxu0 0.0
    %v396 = vand.u32 %v49, 4294901760
    %v397 = vsub.f32 %v49, %v396
    %v398 = vand.u32 %v397, 4294901760
    %399 = vmatpush1.msra.mxu0 %v398
    %400 = vmatprep.subr.mxu0 0.0
    %v401 = vand.u32 %v50, 4294901760
    %v402 = vsub.f32 %v50, %v401
    %v403 = vand.u32 %v402, 4294901760
    %404 = vmatpush1.msra.mxu0 %v403
    %405 = vmatprep.subr.mxu0 0.0
    %v406 = vand.u32 %v51, 4294901760
    %v407 = vsub.f32 %v51, %v406
    %v408 = vand.u32 %v407, 4294901760
    %409 = vmatpush1.msra.mxu0 %v408
    %410 = vmatprep.subr.mxu0 0.0
    %411 = vmatpush1.msra.mxu0 0.0
    %412 = vmatprep.subr.mxu0 0.0
    %413 = vmatpush1.msra.mxu0 0.0
    %414 = vmatprep.subr.mxu0 0.0
    %415 = vmatpush1.msra.mxu0 0.0
    %416 = vmatprep.subr.mxu0 0.0
    %417 = vmatpush1.msra.mxu0 0.0
    %418 = vmatprep.subr.mxu0 0.0
    %419 = vmatpush1.msra.mxu0 0.0
    %420 = vmatprep.subr.mxu0 0.0
    %421 = vmatpush1.msra.mxu0 0.0
    %422 = vmatprep.subr.mxu0 0.0
    %423 = vmatpush1.msra.mxu0 0.0
    %424 = vmatprep.subr.mxu0 0.0
    %425 = vmatpush1.msra.mxu0 0.0
    %426 = vmatprep.subr.mxu0 0.0
    %427 = vmatpush1.msra.mxu0 0.0
    %428 = vmatprep.subr.mxu0 0.0
    %429 = vmatpush1.msra.mxu0 0.0
    %430 = vmatprep.subr.mxu0 0.0
    %431 = vmatpush1.msra.mxu0 0.0
    %432 = vmatprep.subr.mxu0 0.0
    %433 = vmatpush1.msra.mxu0 0.0
    %434 = vmatprep.subr.mxu0 0.0
    %435 = vmatpush1.msra.mxu0 0.0
    %436 = vmatprep.subr.mxu0 0.0
    %437 = vmatpush1.msra.mxu0 0.0
    %438 = vmatprep.subr.mxu0 0.0
    %439 = vmatpush1.msra.mxu0 0.0
    %440 = vmatprep.subr.mxu0 0.0
    %441 = vmatpush1.msra.mxu0 0.0
    %442 = vmatprep.subr.mxu0 0.0
    %443 = vmatpush1.msra.mxu0 0.0
    %444 = vmatprep.subr.mxu0 0.0
    %445 = vmatpush1.msra.mxu0 0.0
    %446 = vmatprep.subr.mxu0 0.0
    %447 = vmatpush1.msra.mxu0 0.0
    %448 = vmatprep.subr.mxu0 0.0
    %449 = vmatpush1.msra.mxu0 0.0
    %450 = vmatprep.subr.mxu0 0.0
    %451 = vmatpush1.msra.mxu0 0.0
    %452 = vmatprep.subr.mxu0 0.0
    %453 = vmatpush1.msra.mxu0 0.0
    %454 = vmatprep.subr.mxu0 0.0
    %455 = vmatpush1.msra.mxu0 0.0
    %456 = vmatprep.subr.mxu0 0.0
    %457 = vmatpush1.msra.mxu0 0.0
    %458 = vmatprep.subr.mxu0 0.0
    %459 = vmatpush1.msra.mxu0 0.0
    %460 = vmatprep.subr.mxu0 0.0
    %461 = vmatpush1.msra.mxu0 0.0
    %462 = vmatprep.subr.mxu0 0.0
    %463 = vmatpush1.msra.mxu0 0.0
    %464 = vmatprep.subr.mxu0 0.0
    %465 = vmatpush1.msra.mxu0 0.0
    %466 = vmatprep.mubr.f32.mxu0 0.0
    %v467 = vand.u32 %v61, 4294901760
    %468 = vmatmul.mubr.f32.gmra.mrb[0].mxu0 %v467
    %v469 = vpop.f32.mrb[0].mxu0
    %v470 = vadd.f32 %v387, %v469
    %v471 = vpop.f32.mrb[0].mxu0
    %472 = vdwg.mxu0
    %473 = vmatprep.subr.mxu0 0.0
    %v474 = vand.u32 %v48, 4294901760
    %475 = vmatpush1.msra.mxu0 %v474
    %476 = vmatprep.subr.mxu0 0.0
    %v477 = vand.u32 %v49, 4294901760
    %478 = vmatpush1.msra.mxu0 %v477
    %479 = vmatprep.subr.mxu0 0.0
    %v480 = vand.u32 %v50, 4294901760
    %481 = vmatpush1.msra.mxu0 %v480
    %482 = vmatprep.subr.mxu0 0.0
    %v483 = vand.u32 %v51, 4294901760
    %484 = vmatpush1.msra.mxu0 %v483
    %485 = vmatprep.subr.mxu0 0.0
    %486 = vmatpush1.msra.mxu0 0.0
    %487 = vmatprep.subr.mxu0 0.0
    %488 = vmatpush1.msra.mxu0 0.0
    %489 = vmatprep.subr.mxu0 0.0
    %490 = vmatpush1.msra.mxu0 0.0
    %491 = vmatprep.subr.mxu0 0.0
    %492 = vmatpush1.msra.mxu0 0.0
    %493 = vmatprep.subr.mxu0 0.0
    %494 = vmatpush1.msra.mxu0 0.0
    %495 = vmatprep.subr.mxu0 0.0
    %496 = vmatpush1.msra.mxu0 0.0
    %497 = vmatprep.subr.mxu0 0.0
    %498 = vmatpush1.msra.mxu0 0.0
    %499 = vmatprep.subr.mxu0 0.0
    %500 = vmatpush1.msra.mxu0 0.0
    %501 = vmatprep.subr.mxu0 0.0
    %502 = vmatpush1.msra.mxu0 0.0
    %503 = vmatprep.subr.mxu0 0.0
    %504 = vmatpush1.msra.mxu0 0.0
    %505 = vmatprep.subr.mxu0 0.0
    %506 = vmatpush1.msra.mxu0 0.0
    %507 = vmatprep.subr.mxu0 0.0
    %508 = vmatpush1.msra.mxu0 0.0
    %509 = vmatprep.subr.mxu0 0.0
    %510 = vmatpush1.msra.mxu0 0.0
    %511 = vmatprep.subr.mxu0 0.0
    %512 = vmatpush1.msra.mxu0 0.0
    %513 = vmatprep.subr.mxu0 0.0
    %514 = vmatpush1.msra.mxu0 0.0
    %515 = vmatprep.subr.mxu0 0.0
    %516 = vmatpush1.msra.mxu0 0.0
    %517 = vmatprep.subr.mxu0 0.0
    %518 = vmatpush1.msra.mxu0 0.0
    %519 = vmatprep.subr.mxu0 0.0
    %520 = vmatpush1.msra.mxu0 0.0
    %521 = vmatprep.subr.mxu0 0.0
    %522 = vmatpush1.msra.mxu0 0.0
    %523 = vmatprep.subr.mxu0 0.0
    %524 = vmatpush1.msra.mxu0 0.0
    %525 = vmatprep.subr.mxu0 0.0
    %526 = vmatpush1.msra.mxu0 0.0
    %527 = vmatprep.subr.mxu0 0.0
    %528 = vmatpush1.msra.mxu0 0.0
    %529 = vmatprep.subr.mxu0 0.0
    %530 = vmatpush1.msra.mxu0 0.0
    %531 = vmatprep.subr.mxu0 0.0
    %532 = vmatpush1.msra.mxu0 0.0
    %533 = vmatprep.subr.mxu0 0.0
    %534 = vmatpush1.msra.mxu0 0.0
    %535 = vmatprep.subr.mxu0 0.0
    %536 = vmatpush1.msra.mxu0 0.0
    %537 = vmatprep.subr.mxu0 0.0
    %538 = vmatpush1.msra.mxu0 0.0
    %539 = vmatprep.subr.mxu0 0.0
    %540 = vmatpush1.msra.mxu0 0.0
    %541 = vmatprep.mubr.f32.mxu0 0.0
    %v542 = vand.u32 %v61, 4294901760
    %543 = vmatmul.mubr.f32.gmra.mrb[0].mxu0 %v542
    %v544 = vpop.f32.mrb[0].mxu0
    %v545 = vadd.f32 %v470, %v544
    %v546 = vpop.f32.mrb[0].mxu0
    %547 = vdwg.mxu0
    %v548 = vld [vmem:[%s3] sm:$0xff]
    %v549 = vlaneseq
    %v550 = vand.u32 %v549, 127
    %551 = vset.pattern.permute.xlu0 0
    %552 = vperm.xlu0 %551, %v548
    %v553 = vpop.permute.xlu0 %552
    %vm554 = vcmp.eq.s32.totalorder %v553, %v550
    %v555 = vsel %vm554, 1, 0
    %v556 = vcvt.s32.f32 %v555
    %v557 = vld [vmem:[%s4] sm:$0xff]
    %v558 = vld [vmem:[%s4 + $0x8] sm:$0xff]
    %vm559 = vcmask 130048
    %v561 = vsel %vm559, %v556, 0
    %563 = vmatprep.subr.mxu0 0.0
    %v564 = vand.u32 %v557, 4294901760
    %565 = vmatpush1.msra.mxu0 %v564
    %566 = vmatprep.subr.mxu0 0.0
    %v567 = vand.u32 %v558, 4294901760
    %568 = vmatpush1.msra.mxu0 %v567
    %569 = vmatprep.subr.mxu0 0.0
    %570 = vmatpush1.msra.mxu0 0.0
    %571 = vmatprep.subr.mxu0 0.0
    %572 = vmatpush1.msra.mxu0 0.0
    %573 = vmatprep.subr.mxu0 0.0
    %574 = vmatpush1.msra.mxu0 0.0
    %575 = vmatprep.subr.mxu0 0.0
    %576 = vmatpush1.msra.mxu0 0.0
    %577 = vmatprep.subr.mxu0 0.0
    %578 = vmatpush1.msra.mxu0 0.0
    %579 = vmatprep.subr.mxu0 0.0
    %580 = vmatpush1.msra.mxu0 0.0
    %581 = vmatprep.subr.mxu0 0.0
    %582 = vmatpush1.msra.mxu0 0.0
    %583 = vmatprep.subr.mxu0 0.0
    %584 = vmatpush1.msra.mxu0 0.0
    %585 = vmatprep.subr.mxu0 0.0
    %586 = vmatpush1.msra.mxu0 0.0
    %587 = vmatprep.subr.mxu0 0.0
    %588 = vmatpush1.msra.mxu0 0.0
    %589 = vmatprep.subr.mxu0 0.0
    %590 = vmatpush1.msra.mxu0 0.0
    %591 = vmatprep.subr.mxu0 0.0
    %592 = vmatpush1.msra.mxu0 0.0
    %593 = vmatprep.subr.mxu0 0.0
    %594 = vmatpush1.msra.mxu0 0.0
    %595 = vmatprep.subr.mxu0 0.0
    %596 = vmatpush1.msra.mxu0 0.0
    %597 = vmatprep.subr.mxu0 0.0
    %598 = vmatpush1.msra.mxu0 0.0
    %599 = vmatprep.subr.mxu0 0.0
    %600 = vmatpush1.msra.mxu0 0.0
    %601 = vmatprep.subr.mxu0 0.0
    %602 = vmatpush1.msra.mxu0 0.0
    %603 = vmatprep.subr.mxu0 0.0
    %604 = vmatpush1.msra.mxu0 0.0
    %605 = vmatprep.subr.mxu0 0.0
    %606 = vmatpush1.msra.mxu0 0.0
    %607 = vmatprep.subr.mxu0 0.0
    %608 = vmatpush1.msra.mxu0 0.0
    %609 = vmatprep.subr.mxu0 0.0
    %610 = vmatpush1.msra.mxu0 0.0
    %611 = vmatprep.subr.mxu0 0.0
    %612 = vmatpush1.msra.mxu0 0.0
    %613 = vmatprep.subr.mxu0 0.0
    %614 = vmatpush1.msra.mxu0 0.0
    %615 = vmatprep.subr.mxu0 0.0
    %616 = vmatpush1.msra.mxu0 0.0
    %617 = vmatprep.subr.mxu0 0.0
    %618 = vmatpush1.msra.mxu0 0.0
    %619 = vmatprep.subr.mxu0 0.0
    %620 = vmatpush1.msra.mxu0 0.0
    %621 = vmatprep.subr.mxu0 0.0
    %622 = vmatpush1.msra.mxu0 0.0
    %623 = vmatprep.subr.mxu0 0.0
    %624 = vmatpush1.msra.mxu0 0.0
    %625 = vmatprep.subr.mxu0 0.0
    %626 = vmatpush1.msra.mxu0 0.0
    %627 = vmatprep.subr.mxu0 0.0
    %628 = vmatpush1.msra.mxu0 0.0
    %629 = vmatprep.mubr.f32.mxu0 0.0
    %v630 = vand.u32 %v561, 4294901760
    %v631 = vsub.f32 %v561, %v630
    %v632 = vand.u32 %v631, 4294901760
    %v633 = vsub.f32 %v631, %v632
    %v634 = vand.u32 %v633, 4294901760
    %635 = vmatmul.mubr.f32.gmra.mrb[0].mxu0 %v634
    %v636 = vpop.f32.mrb[0].mxu0
    %v637 = vadd.f32 0.0, %v636
    %v638 = vpop.f32.mrb[0].mxu0
    %639 = vdwg.mxu0
    %640 = vmatprep.subr.mxu0 0.0
    %v641 = vand.u32 %v557, 4294901760
    %v642 = vsub.f32 %v557, %v641
    %v643 = vand.u32 %v642, 4294901760
    %v644 = vsub.f32 %v642, %v643
    %v645 = vand.u32 %v644, 4294901760
    %646 = vmatpush1.msra.mxu0 %v645
    %647 = vmatprep.subr.mxu0 0.0
    %v648 = vand.u32 %v558, 4294901760
    %v649 = vsub.f32 %v558, %v648
    %v650 = vand.u32 %v649, 4294901760
    %v651 = vsub.f32 %v649, %v650
    %v652 = vand.u32 %v651, 4294901760
    %653 = vmatpush1.msra.mxu0 %v652
    %654 = vmatprep.subr.mxu0 0.0
    %655 = vmatpush1.msra.mxu0 0.0
    %656 = vmatprep.subr.mxu0 0.0
    %657 = vmatpush1.msra.mxu0 0.0
    %658 = vmatprep.subr.mxu0 0.0
    %659 = vmatpush1.msra.mxu0 0.0
    %660 = vmatprep.subr.mxu0 0.0
    %661 = vmatpush1.msra.mxu0 0.0
    %662 = vmatprep.subr.mxu0 0.0
    %663 = vmatpush1.msra.mxu0 0.0
    %664 = vmatprep.subr.mxu0 0.0
    %665 = vmatpush1.msra.mxu0 0.0
    %666 = vmatprep.subr.mxu0 0.0
    %667 = vmatpush1.msra.mxu0 0.0
    %668 = vmatprep.subr.mxu0 0.0
    %669 = vmatpush1.msra.mxu0 0.0
    %670 = vmatprep.subr.mxu0 0.0
    %671 = vmatpush1.msra.mxu0 0.0
    %672 = vmatprep.subr.mxu0 0.0
    %673 = vmatpush1.msra.mxu0 0.0
    %674 = vmatprep.subr.mxu0 0.0
    %675 = vmatpush1.msra.mxu0 0.0
    %676 = vmatprep.subr.mxu0 0.0
    %677 = vmatpush1.msra.mxu0 0.0
    %678 = vmatprep.subr.mxu0 0.0
    %679 = vmatpush1.msra.mxu0 0.0
    %680 = vmatprep.subr.mxu0 0.0
    %681 = vmatpush1.msra.mxu0 0.0
    %682 = vmatprep.subr.mxu0 0.0
    %683 = vmatpush1.msra.mxu0 0.0
    %684 = vmatprep.subr.mxu0 0.0
    %685 = vmatpush1.msra.mxu0 0.0
    %686 = vmatprep.subr.mxu0 0.0
    %687 = vmatpush1.msra.mxu0 0.0
    %688 = vmatprep.subr.mxu0 0.0
    %689 = vmatpush1.msra.mxu0 0.0
    %690 = vmatprep.subr.mxu0 0.0
    %691 = vmatpush1.msra.mxu0 0.0
    %692 = vmatprep.subr.mxu0 0.0
    %693 = vmatpush1.msra.mxu0 0.0
    %694 = vmatprep.subr.mxu0 0.0
    %695 = vmatpush1.msra.mxu0 0.0
    %696 = vmatprep.subr.mxu0 0.0
    %697 = vmatpush1.msra.mxu0 0.0
    %698 = vmatprep.subr.mxu0 0.0
    %699 = vmatpush1.msra.mxu0 0.0
    %700 = vmatprep.subr.mxu0 0.0
    %701 = vmatpush1.msra.mxu0 0.0
    %702 = vmatprep.subr.mxu0 0.0
    %703 = vmatpush1.msra.mxu0 0.0
    %704 = vmatprep.subr.mxu0 0.0
    %705 = vmatpush1.msra.mxu0 0.0
    %706 = vmatprep.subr.mxu0 0.0
    %707 = vmatpush1.msra.mxu0 0.0
    %708 = vmatprep.subr.mxu0 0.0
    %709 = vmatpush1.msra.mxu0 0.0
    %710 = vmatprep.subr.mxu0 0.0
    %711 = vmatpush1.msra.mxu0 0.0
    %712 = vmatprep.subr.mxu0 0.0
    %713 = vmatpush1.msra.mxu0 0.0
    %714 = vmatprep.mubr.f32.mxu0 0.0
    %v715 = vand.u32 %v561, 4294901760
    %716 = vmatmul.mubr.f32.gmra.mrb[0].mxu0 %v715
    %v717 = vpop.f32.mrb[0].mxu0
    %v718 = vadd.f32 %v637, %v717
    %v719 = vpop.f32.mrb[0].mxu0
    %720 = vdwg.mxu0
    %721 = vmatprep.subr.mxu0 0.0
    %v722 = vand.u32 %v557, 4294901760
    %v723 = vsub.f32 %v557, %v722
    %724 = vmatpush1.msra.mxu0 %v723
    %725 = vmatprep.subr.mxu0 0.0
    %v726 = vand.u32 %v558, 4294901760
    %v727 = vsub.f32 %v558, %v726
    %728 = vmatpush1.msra.mxu0 %v727
    %729 = vmatprep.subr.mxu0 0.0
    %730 = vmatpush1.msra.mxu0 0.0
    %731 = vmatprep.subr.mxu0 0.0
    %732 = vmatpush1.msra.mxu0 0.0
    %733 = vmatprep.subr.mxu0 0.0
    %734 = vmatpush1.msra.mxu0 0.0
    %735 = vmatprep.subr.mxu0 0.0
    %736 = vmatpush1.msra.mxu0 0.0
    %737 = vmatprep.subr.mxu0 0.0
    %738 = vmatpush1.msra.mxu0 0.0
    %739 = vmatprep.subr.mxu0 0.0
    %740 = vmatpush1.msra.mxu0 0.0
    %741 = vmatprep.subr.mxu0 0.0
    %742 = vmatpush1.msra.mxu0 0.0
    %743 = vmatprep.subr.mxu0 0.0
    %744 = vmatpush1.msra.mxu0 0.0
    %745 = vmatprep.subr.mxu0 0.0
    %746 = vmatpush1.msra.mxu0 0.0
    %747 = vmatprep.subr.mxu0 0.0
    %748 = vmatpush1.msra.mxu0 0.0
    %749 = vmatprep.subr.mxu0 0.0
    %750 = vmatpush1.msra.mxu0 0.0
    %751 = vmatprep.subr.mxu0 0.0
    %752 = vmatpush1.msra.mxu0 0.0
    %753 = vmatprep.subr.mxu0 0.0
    %754 = vmatpush1.msra.mxu0 0.0
    %755 = vmatprep.subr.mxu0 0.0
    %756 = vmatpush1.msra.mxu0 0.0
    %757 = vmatprep.subr.mxu0 0.0
    %758 = vmatpush1.msra.mxu0 0.0
    %759 = vmatprep.subr.mxu0 0.0
    %760 = vmatpush1.msra.mxu0 0.0
    %761 = vmatprep.subr.mxu0 0.0
    %762 = vmatpush1.msra.mxu0 0.0
    %763 = vmatprep.subr.mxu0 0.0
    %764 = vmatpush1.msra.mxu0 0.0
    %765 = vmatprep.subr.mxu0 0.0
    %766 = vmatpush1.msra.mxu0 0.0
    %767 = vmatprep.subr.mxu0 0.0
    %768 = vmatpush1.msra.mxu0 0.0
    %769 = vmatprep.subr.mxu0 0.0
    %770 = vmatpush1.msra.mxu0 0.0
    %771 = vmatprep.subr.mxu0 0.0
    %772 = vmatpush1.msra.mxu0 0.0
    %773 = vmatprep.subr.mxu0 0.0
    %774 = vmatpush1.msra.mxu0 0.0
    %775 = vmatprep.subr.mxu0 0.0
    %776 = vmatpush1.msra.mxu0 0.0
    %777 = vmatprep.subr.mxu0 0.0
    %778 = vmatpush1.msra.mxu0 0.0
    %779 = vmatprep.subr.mxu0 0.0
    %780 = vmatpush1.msra.mxu0 0.0
    %781 = vmatprep.subr.mxu0 0.0
    %782 = vmatpush1.msra.mxu0 0.0
    %783 = vmatprep.subr.mxu0 0.0
    %784 = vmatpush1.msra.mxu0 0.0
    %785 = vmatprep.subr.mxu0 0.0
    %786 = vmatpush1.msra.mxu0 0.0
    %787 = vmatprep.subr.mxu0 0.0
    %788 = vmatpush1.msra.mxu0 0.0
    %789 = vmatprep.mubr.f32.mxu0 0.0
    %v790 = vand.u32 %v561, 4294901760
    %v791 = vsub.f32 %v561, %v790
    %792 = vmatmul.mubr.f32.gmra.mrb[0].mxu0 %v791
    %v793 = vpop.f32.mrb[0].mxu0
    %v794 = vadd.f32 %v718, %v793
    %v795 = vpop.f32.mrb[0].mxu0
    %796 = vdwg.mxu0
    %797 = vmatprep.subr.mxu0 0.0
    %v798 = vand.u32 %v557, 4294901760
    %799 = vmatpush1.msra.mxu0 %v798
    %800 = vmatprep.subr.mxu0 0.0
    %v801 = vand.u32 %v558, 4294901760
    %802 = vmatpush1.msra.mxu0 %v801
    %803 = vmatprep.subr.mxu0 0.0
    %804 = vmatpush1.msra.mxu0 0.0
    %805 = vmatprep.subr.mxu0 0.0
    %806 = vmatpush1.msra.mxu0 0.0
    %807 = vmatprep.subr.mxu0 0.0
    %808 = vmatpush1.msra.mxu0 0.0
    %809 = vmatprep.subr.mxu0 0.0
    %810 = vmatpush1.msra.mxu0 0.0
    %811 = vmatprep.subr.mxu0 0.0
    %812 = vmatpush1.msra.mxu0 0.0
    %813 = vmatprep.subr.mxu0 0.0
    %814 = vmatpush1.msra.mxu0 0.0
    %815 = vmatprep.subr.mxu0 0.0
    %816 = vmatpush1.msra.mxu0 0.0
    %817 = vmatprep.subr.mxu0 0.0
    %818 = vmatpush1.msra.mxu0 0.0
    %819 = vmatprep.subr.mxu0 0.0
    %820 = vmatpush1.msra.mxu0 0.0
    %821 = vmatprep.subr.mxu0 0.0
    %822 = vmatpush1.msra.mxu0 0.0
    %823 = vmatprep.subr.mxu0 0.0
    %824 = vmatpush1.msra.mxu0 0.0
    %825 = vmatprep.subr.mxu0 0.0
    %826 = vmatpush1.msra.mxu0 0.0
    %827 = vmatprep.subr.mxu0 0.0
    %828 = vmatpush1.msra.mxu0 0.0
    %829 = vmatprep.subr.mxu0 0.0
    %830 = vmatpush1.msra.mxu0 0.0
    %831 = vmatprep.subr.mxu0 0.0
    %832 = vmatpush1.msra.mxu0 0.0
    %833 = vmatprep.subr.mxu0 0.0
    %834 = vmatpush1.msra.mxu0 0.0
    %835 = vmatprep.subr.mxu0 0.0
    %836 = vmatpush1.msra.mxu0 0.0
    %837 = vmatprep.subr.mxu0 0.0
    %838 = vmatpush1.msra.mxu0 0.0
    %839 = vmatprep.subr.mxu0 0.0
    %840 = vmatpush1.msra.mxu0 0.0
    %841 = vmatprep.subr.mxu0 0.0
    %842 = vmatpush1.msra.mxu0 0.0
    %843 = vmatprep.subr.mxu0 0.0
    %844 = vmatpush1.msra.mxu0 0.0
    %845 = vmatprep.subr.mxu0 0.0
    %846 = vmatpush1.msra.mxu0 0.0
    %847 = vmatprep.subr.mxu0 0.0
    %848 = vmatpush1.msra.mxu0 0.0
    %849 = vmatprep.subr.mxu0 0.0
    %850 = vmatpush1.msra.mxu0 0.0
    %851 = vmatprep.subr.mxu0 0.0
    %852 = vmatpush1.msra.mxu0 0.0
    %853 = vmatprep.subr.mxu0 0.0
    %854 = vmatpush1.msra.mxu0 0.0
    %855 = vmatprep.subr.mxu0 0.0
    %856 = vmatpush1.msra.mxu0 0.0
    %857 = vmatprep.subr.mxu0 0.0
    %858 = vmatpush1.msra.mxu0 0.0
    %859 = vmatprep.subr.mxu0 0.0
    %860 = vmatpush1.msra.mxu0 0.0
    %861 = vmatprep.subr.mxu0 0.0
    %862 = vmatpush1.msra.mxu0 0.0
    %863 = vmatprep.mubr.f32.mxu0 0.0
    %v864 = vand.u32 %v561, 4294901760
    %v865 = vsub.f32 %v561, %v864
    %v866 = vand.u32 %v865, 4294901760
    %867 = vmatmul.mubr.f32.gmra.mrb[0].mxu0 %v866
    %v868 = vpop.f32.mrb[0].mxu0
    %v869 = vadd.f32 %v794, %v868
    %v870 = vpop.f32.mrb[0].mxu0
    %871 = vdwg.mxu0
    %872 = vmatprep.subr.mxu0 0.0
    %v873 = vand.u32 %v557, 4294901760
    %v874 = vsub.f32 %v557, %v873
    %v875 = vand.u32 %v874, 4294901760
    %876 = vmatpush1.msra.mxu0 %v875
    %877 = vmatprep.subr.mxu0 0.0
    %v878 = vand.u32 %v558, 4294901760
    %v879 = vsub.f32 %v558, %v878
    %v880 = vand.u32 %v879, 4294901760
    %881 = vmatpush1.msra.mxu0 %v880
    %882 = vmatprep.subr.mxu0 0.0
    %883 = vmatpush1.msra.mxu0 0.0
    %884 = vmatprep.subr.mxu0 0.0
    %885 = vmatpush1.msra.mxu0 0.0
    %886 = vmatprep.subr.mxu0 0.0
    %887 = vmatpush1.msra.mxu0 0.0
    %888 = vmatprep.subr.mxu0 0.0
    %889 = vmatpush1.msra.mxu0 0.0
    %890 = vmatprep.subr.mxu0 0.0
    %891 = vmatpush1.msra.mxu0 0.0
    %892 = vmatprep.subr.mxu0 0.0
    %893 = vmatpush1.msra.mxu0 0.0
    %894 = vmatprep.subr.mxu0 0.0
    %895 = vmatpush1.msra.mxu0 0.0
    %896 = vmatprep.subr.mxu0 0.0
    %897 = vmatpush1.msra.mxu0 0.0
    %898 = vmatprep.subr.mxu0 0.0
    %899 = vmatpush1.msra.mxu0 0.0
    %900 = vmatprep.subr.mxu0 0.0
    %901 = vmatpush1.msra.mxu0 0.0
    %902 = vmatprep.subr.mxu0 0.0
    %903 = vmatpush1.msra.mxu0 0.0
    %904 = vmatprep.subr.mxu0 0.0
    %905 = vmatpush1.msra.mxu0 0.0
    %906 = vmatprep.subr.mxu0 0.0
    %907 = vmatpush1.msra.mxu0 0.0
    %908 = vmatprep.subr.mxu0 0.0
    %909 = vmatpush1.msra.mxu0 0.0
    %910 = vmatprep.subr.mxu0 0.0
    %911 = vmatpush1.msra.mxu0 0.0
    %912 = vmatprep.subr.mxu0 0.0
    %913 = vmatpush1.msra.mxu0 0.0
    %914 = vmatprep.subr.mxu0 0.0
    %915 = vmatpush1.msra.mxu0 0.0
    %916 = vmatprep.subr.mxu0 0.0
    %917 = vmatpush1.msra.mxu0 0.0
    %918 = vmatprep.subr.mxu0 0.0
    %919 = vmatpush1.msra.mxu0 0.0
    %920 = vmatprep.subr.mxu0 0.0
    %921 = vmatpush1.msra.mxu0 0.0
    %922 = vmatprep.subr.mxu0 0.0
    %923 = vmatpush1.msra.mxu0 0.0
    %924 = vmatprep.subr.mxu0 0.0
    %925 = vmatpush1.msra.mxu0 0.0
    %926 = vmatprep.subr.mxu0 0.0
    %927 = vmatpush1.msra.mxu0 0.0
    %928 = vmatprep.subr.mxu0 0.0
    %929 = vmatpush1.msra.mxu0 0.0
    %930 = vmatprep.subr.mxu0 0.0
    %931 = vmatpush1.msra.mxu0 0.0
    %932 = vmatprep.subr.mxu0 0.0
    %933 = vmatpush1.msra.mxu0 0.0
    %934 = vmatprep.subr.mxu0 0.0
    %935 = vmatpush1.msra.mxu0 0.0
    %936 = vmatprep.subr.mxu0 0.0
    %937 = vmatpush1.msra.mxu0 0.0
    %938 = vmatprep.subr.mxu0 0.0
    %939 = vmatpush1.msra.mxu0 0.0
    %940 = vmatprep.subr.mxu0 0.0
    %941 = vmatpush1.msra.mxu0 0.0
    %942 = vmatprep.mubr.f32.mxu0 0.0
    %v943 = vand.u32 %v561, 4294901760
    %944 = vmatmul.mubr.f32.gmra.mrb[0].mxu0 %v943
    %v945 = vpop.f32.mrb[0].mxu0
    %v946 = vadd.f32 %v869, %v945
    %v947 = vpop.f32.mrb[0].mxu0
    %948 = vdwg.mxu0
    %949 = vmatprep.subr.mxu0 0.0
    %v950 = vand.u32 %v557, 4294901760
    %951 = vmatpush1.msra.mxu0 %v950
    %952 = vmatprep.subr.mxu0 0.0
    %v953 = vand.u32 %v558, 4294901760
    %954 = vmatpush1.msra.mxu0 %v953
    %955 = vmatprep.subr.mxu0 0.0
    %956 = vmatpush1.msra.mxu0 0.0
    %957 = vmatprep.subr.mxu0 0.0
    %958 = vmatpush1.msra.mxu0 0.0
    %959 = vmatprep.subr.mxu0 0.0
    %960 = vmatpush1.msra.mxu0 0.0
    %961 = vmatprep.subr.mxu0 0.0
    %962 = vmatpush1.msra.mxu0 0.0
    %963 = vmatprep.subr.mxu0 0.0
    %964 = vmatpush1.msra.mxu0 0.0
    %965 = vmatprep.subr.mxu0 0.0
    %966 = vmatpush1.msra.mxu0 0.0
    %967 = vmatprep.subr.mxu0 0.0
    %968 = vmatpush1.msra.mxu0 0.0
    %969 = vmatprep.subr.mxu0 0.0
    %970 = vmatpush1.msra.mxu0 0.0
    %971 = vmatprep.subr.mxu0 0.0
    %972 = vmatpush1.msra.mxu0 0.0
    %973 = vmatprep.subr.mxu0 0.0
    %974 = vmatpush1.msra.mxu0 0.0
    %975 = vmatprep.subr.mxu0 0.0
    %976 = vmatpush1.msra.mxu0 0.0
    %977 = vmatprep.subr.mxu0 0.0
    %978 = vmatpush1.msra.mxu0 0.0
    %979 = vmatprep.subr.mxu0 0.0
    %980 = vmatpush1.msra.mxu0 0.0
    %981 = vmatprep.subr.mxu0 0.0
    %982 = vmatpush1.msra.mxu0 0.0
    %983 = vmatprep.subr.mxu0 0.0
    %984 = vmatpush1.msra.mxu0 0.0
    %985 = vmatprep.subr.mxu0 0.0
    %986 = vmatpush1.msra.mxu0 0.0
    %987 = vmatprep.subr.mxu0 0.0
    %988 = vmatpush1.msra.mxu0 0.0
    %989 = vmatprep.subr.mxu0 0.0
    %990 = vmatpush1.msra.mxu0 0.0
    %991 = vmatprep.subr.mxu0 0.0
    %992 = vmatpush1.msra.mxu0 0.0
    %993 = vmatprep.subr.mxu0 0.0
    %994 = vmatpush1.msra.mxu0 0.0
    %995 = vmatprep.subr.mxu0 0.0
    %996 = vmatpush1.msra.mxu0 0.0
    %997 = vmatprep.subr.mxu0 0.0
    %998 = vmatpush1.msra.mxu0 0.0
    %999 = vmatprep.subr.mxu0 0.0
    %1000 = vmatpush1.msra.mxu0 0.0
    %1001 = vmatprep.subr.mxu0 0.0
    %1002 = vmatpush1.msra.mxu0 0.0
    %1003 = vmatprep.subr.mxu0 0.0
    %1004 = vmatpush1.msra.mxu0 0.0
    %1005 = vmatprep.subr.mxu0 0.0
    %1006 = vmatpush1.msra.mxu0 0.0
    %1007 = vmatprep.subr.mxu0 0.0
    %1008 = vmatpush1.msra.mxu0 0.0
    %1009 = vmatprep.subr.mxu0 0.0
    %1010 = vmatpush1.msra.mxu0 0.0
    %1011 = vmatprep.subr.mxu0 0.0
    %1012 = vmatpush1.msra.mxu0 0.0
    %1013 = vmatprep.subr.mxu0 0.0
    %1014 = vmatpush1.msra.mxu0 0.0
    %1015 = vmatprep.mubr.f32.mxu0 0.0
    %v1016 = vand.u32 %v561, 4294901760
    %1017 = vmatmul.mubr.f32.gmra.mrb[0].mxu0 %v1016
    %v1018 = vpop.f32.mrb[0].mxu0
    %v1019 = vadd.f32 %v946, %v1018
    %v1020 = vpop.f32.mrb[0].mxu0
    %1021 = vdwg.mxu0
    %v1022 = vmul.f32 %v1019, %v545
    %1023 = vst [vmem:[#allocation7] sm:$0xff] %v1022
    // Predicated region
    $region30: #{tpu_custom_call.1} parent=1 // pred_check
      _
    $region31: #{tpu_custom_call.1} parent=1 // pred_check_branch
      %1025 = sbr.rel (0) target = $region33
    $region32: #{tpu_custom_call.1} parent=1 // pred_region
      %s1027 = ssub.s32 128, 128
      %1028 = vsyncadd [#allocation4], %s1027
      %s1030 = sshll.u32 [#allocation7], 4
      %s1031 = int_to_ptr.vmem [resolvable:$true] %s1030
      %1033 = dma.vmem_to_hbm [thread:$0]  %s1031, 128, %s5, [#allocation4]
    $region33: #{tpu_custom_call.1} parent=1 // pred_fallthru
      _
    // Predicated region
    $region34: #{tpu_custom_call.1} parent=1 // pred_check
      _
    $region35: #{tpu_custom_call.1} parent=1 // pred_check_branch
      %1035 = sbr.rel (0) target = $region37
    $region36: #{tpu_custom_call.1} parent=1 // pred_region
      %1036 = dma.done [#allocation4], 128
    $region37: #{tpu_custom_call.1} parent=1 // pred_fallthru
      _
    %1037 = vsyncpa [#allocation3], 1
    %1038 = vsyncpa [#allocation6], 1
    %1039 = vsyncpa [#allocation4], 1

</llo_original>
